<compile_context>
chip_gen: v7x
topology: tpu7x:2x2x1
jax: 0.10.0
libtpu: 0.0.40
codegen_flags: <defaults>
</compile_context>

<pallas_src>
import jax
import jax.numpy as jnp
from jax.experimental import pallas as pl
from jax.experimental.pallas import tpu as pltpu


# ----------------------------- configuration -------------------------------
N_AGENT_ORI = 2
N_ADVERSARY_ORI = 2
N_AGENT = 2
N_ADVERSARY = 2
N_LANDMARK = 2
HIDDEN_DIM = 32
OUT_DIM = 1
BATCH = 4
BN_EPS = 1e-5

AG_OBS_LEN = 2 + 2 + 2 * N_LANDMARK + (2 + 2) * (N_AGENT - 1) + 2 * N_ADVERSARY   # 16
AD_OBS_LEN = 2 + 2 + 2 * N_LANDMARK + 2 * (N_ADVERSARY - 1) + (2 + 2) * N_AGENT   # 18
ACT_LEN = 2
AD_IN = AD_OBS_LEN + ACT_LEN                       # RNN input size (20)
H_RNN = AD_IN * N_ADVERSARY_ORI                    # RNN hidden size (40)
TOTAL_OBS = N_ADVERSARY * AD_OBS_LEN + N_AGENT * AG_OBS_LEN
INPUT_DIM = TOTAL_OBS + ACT_LEN * (N_ADVERSARY + N_AGENT)   # 76
# consistency check (forward of the torch module only works when this holds)
assert INPUT_DIM == N_AGENT * (AG_OBS_LEN + ACT_LEN) + H_RNN

# ------------------------- packed weight-slab layout ------------------------
# Rows 0..75 are indexed exactly like the (post-shuffle) columns of x.
# Row 76 holds biases.  Each weight block starts at a 128-aligned column.
ROW_BIAS = INPUT_DIM                                # 76
SLAB_ROWS = ((INPUT_DIM + 1 + 7) // 8) * 8          # 80
COL_IH = lambda t: t * 128                          # RNN ih block for step t
COL_FC1X = N_ADVERSARY * 128                        # 256: fc1 (xn-dependent rows)
COL_WHH = COL_FC1X + 128                            # 384: W_hh^T
COL_W1H = COL_WHH + 128                             # 512: fc1 (h-dependent rows)
COL_W2 = COL_W1H + 128                              # 640: fc2
COL_W3 = COL_W2 + 128                               # 768: fc3 (zero-padded to 128)
OUT_PAD = 128
SLAB_COLS = COL_W3 + OUT_PAD                        # 896
FUSED_COLS = COL_FC1X + HIDDEN_DIM                  # 288: width of the fused MXU pass


# -------------------------------- kernel -----------------------------------
def _critic_kernel(x_ref, w_ref, out_ref):
    x = x_ref[...]                                           # [B, 76]

    # BatchNorm1d in training mode (weight=1, bias=0): per-batch statistics,
    # biased variance, eps = 1e-5.
    mean = jnp.mean(x, axis=0, keepdims=True)
    var = jnp.mean((x - mean) ** 2, axis=0, keepdims=True)
    xn = (x - mean) * jax.lax.rsqrt(var + BN_EPS)

    # One fused MXU pass: RNN input projections for every timestep plus the
    # xn-dependent part of fc1, all in a single [B,76] @ [76,288] product.
    pre_all = jnp.dot(xn, w_ref[0:INPUT_DIM, 0:FUSED_COLS],
                      preferred_element_type=jnp.float32)    # [B, 288]

    brnn = w_ref[ROW_BIAS:ROW_BIAS + 1, 0:H_RNN]             # [1, 40] (b_ih + b_hh)

    # ---- RNN over the adversary "sequence" (static, tiny, unrolled) -------
    # t = 0: the initial hidden state is zero, so skip the h @ W_hh term.
    h = jnp.tanh(pre_all[:, 0:H_RNN] + brnn)
    for t in range(1, N_ADVERSARY):
        c = t * 128
        pre = (pre_all[:, c:c + H_RNN]
               + jnp.dot(h, w_ref[0:H_RNN, COL_WHH:COL_WHH + H_RNN],
                         preferred_element_type=jnp.float32)
               + brnn)
        h = jnp.tanh(pre)

    # ---- fc1: xn-part already in pre_all; add the h-part and bias ---------
    b1 = w_ref[ROW_BIAS:ROW_BIAS + 1, COL_FC1X:COL_FC1X + HIDDEN_DIM]
    h1 = (pre_all[:, COL_FC1X:COL_FC1X + HIDDEN_DIM]
          + jnp.dot(h, w_ref[0:H_RNN, COL_W1H:COL_W1H + HIDDEN_DIM],
                    preferred_element_type=jnp.float32)
          + b1)
    h1 = jnp.maximum(h1, 0.0)

    # ---- fc2 ----------------------------------------------------------------
    b2 = w_ref[ROW_BIAS:ROW_BIAS + 1, COL_W2:COL_W2 + HIDDEN_DIM]
    h2 = jnp.maximum(
        jnp.dot(h1, w_ref[0:HIDDEN_DIM, COL_W2:COL_W2 + HIDDEN_DIM],
                preferred_element_type=jnp.float32) + b2, 0.0)

    # ---- fc3 (constrain_out=False -> identity out_fn) ----------------------
    # w3/b3 are zero-padded to 128 output lanes -> lane-dense store; the real
    # scalar lives in column 0 and is sliced out by the wrapper.
    b3 = w_ref[ROW_BIAS:ROW_BIAS + 1, COL_W3:COL_W3 + OUT_PAD]
    out_ref[...] = (jnp.dot(h2, w_ref[0:HIDDEN_DIM, COL_W3:COL_W3 + OUT_PAD],
                            preferred_element_type=jnp.float32) + b3)


# ------------------------------- glue ----------------------------------------
def init_params(key):
    """Deterministic parameter init (shapes from the torch module's __init__)."""
    ks = jax.random.split(key, 10)
    u = lambda k, shape, bound: jax.random.uniform(
        k, shape, jnp.float32, minval=-bound, maxval=bound
    )
    # nn.RNN(AD_IN, H_RNN): uniform(-1/sqrt(H_RNN), 1/sqrt(H_RNN))
    br = 1.0 / jnp.sqrt(float(H_RNN))
    w_ih = u(ks[0], (H_RNN, AD_IN), br)       # torch layout [hidden, input]
    w_hh = u(ks[1], (H_RNN, H_RNN), br)
    b_ih = u(ks[2], (H_RNN,), br)
    b_hh = u(ks[3], (H_RNN,), br)
    # nn.Linear(in, out): uniform(-1/sqrt(in), 1/sqrt(in)); torch layout [out, in]
    b1 = 1.0 / jnp.sqrt(float(INPUT_DIM))
    w1 = u(ks[4], (HIDDEN_DIM, INPUT_DIM), b1)
    bb1 = u(ks[5], (HIDDEN_DIM,), b1)
    b2 = 1.0 / jnp.sqrt(float(HIDDEN_DIM))
    w2 = u(ks[6], (HIDDEN_DIM, HIDDEN_DIM), b2)
    bb2 = u(ks[7], (HIDDEN_DIM,), b2)
    w3 = u(ks[8], (OUT_DIM, HIDDEN_DIM), b2)
    bb3 = u(ks[9], (OUT_DIM,), b2)
    return dict(w_ih=w_ih, w_hh=w_hh, b_ih=b_ih, b_hh=b_hh,
                w1=w1, b1=bb1, w2=w2, b2=bb2, w3=w3, b3=bb3)


def prepare_params(params):
    """One-time packing of every weight/bias into a single padded f32 slab.

    Called once (hoisted out of the per-call forward); all transposes, splits
    and the block-structured layout for the fused xn-matmul happen here, for
    free, instead of inside / around the kernel at every call.
    """
    w_ih_T = params["w_ih"].T          # [AD_IN, H_RNN]
    w_hh_T = params["w_hh"].T          # [H_RNN, H_RNN]
    w1_T = params["w1"].T              # [INPUT_DIM, HIDDEN_DIM]
    w2_T = params["w2"].T              # [HIDDEN_DIM, HIDDEN_DIM]
    w3_T = params["w3"].T              # [HIDDEN_DIM, OUT_DIM]
    brnn = params["b_ih"] + params["b_hh"]

    W = jnp.zeros((SLAB_ROWS, SLAB_COLS), jnp.float32)

    # RNN input projections: one 128-aligned column block per timestep; the
    # rows follow the (post-shuffle) feature layout of x, so the fused matmul
    # needs no in-kernel gathering of obs_t / act_t.
    for t in range(N_ADVERSARY):
        c = COL_IH(t)
        W = W.at[t * AD_OBS_LEN:(t + 1) * AD_OBS_LEN, c:c + H_RNN].set(
            w_ih_T[:AD_OBS_LEN])
        a = TOTAL_OBS + t * ACT_LEN
        W = W.at[a:a + ACT_LEN, c:c + H_RNN].set(w_ih_T[AD_OBS_LEN:])
    W = W.at[ROW_BIAS, 0:H_RNN].set(brnn)

    # fc1: xn-dependent rows (agent obs + agent act) go into the fused block,
    # the h-dependent rows form their own block.
    n_ao = N_AGENT * AG_OBS_LEN
    n_aa = N_AGENT * ACT_LEN
    ao_col = N_ADVERSARY * AD_OBS_LEN
    aa_col = TOTAL_OBS + N_ADVERSARY * ACT_LEN
    W = W.at[ao_col:ao_col + n_ao, COL_FC1X:COL_FC1X + HIDDEN_DIM].set(w1_T[:n_ao])
    W = W.at[aa_col:aa_col + n_aa, COL_FC1X:COL_FC1X + HIDDEN_DIM].set(
        w1_T[n_ao:n_ao + n_aa])
    W = W.at[ROW_BIAS, COL_FC1X:COL_FC1X + HIDDEN_DIM].set(params["b1"])
    W = W.at[0:H_RNN, COL_W1H:COL_W1H + HIDDEN_DIM].set(w1_T[n_ao + n_aa:])

    # Recurrent weight.
    W = W.at[0:H_RNN, COL_WHH:COL_WHH + H_RNN].set(w_hh_T)

    # fc2 / fc3 (fc3 zero-padded to 128 output lanes).
    W = W.at[0:HIDDEN_DIM, COL_W2:COL_W2 + HIDDEN_DIM].set(w2_T)
    W = W.at[ROW_BIAS, COL_W2:COL_W2 + HIDDEN_DIM].set(params["b2"])
    W = W.at[0:HIDDEN_DIM, COL_W3:COL_W3 + OUT_DIM].set(w3_T)
    W = W.at[ROW_BIAS, COL_W3:COL_W3 + OUT_DIM].set(params["b3"])
    return W


_COST = pl.CostEstimate(
    flops=2 * BATCH * (INPUT_DIM * FUSED_COLS
                       + (N_ADVERSARY - 1) * H_RNN * H_RNN
                       + H_RNN * HIDDEN_DIM
                       + HIDDEN_DIM * HIDDEN_DIM
                       + HIDDEN_DIM * OUT_PAD),
    transcendentals=BATCH * H_RNN * N_ADVERSARY,
    bytes_accessed=4 * (BATCH * INPUT_DIM + SLAB_ROWS * SLAB_COLS + BATCH * OUT_PAD),
)


def critic_forward(w_slab, x, perm):
    """Runs the Pallas kernel.  `perm` plays the role of torch.randperm (shuffle=True)."""
    x = x[:, perm]                                          # column shuffle (glue)
    vmem = pl.BlockSpec(memory_space=pltpu.MemorySpace.VMEM)
    out_pad = pl.pallas_call(
        _critic_kernel,
        out_shape=jax.ShapeDtypeStruct((x.shape[0], OUT_PAD), jnp.float32),
        in_specs=[vmem, vmem],
        out_specs=vmem,
        cost_estimate=_COST,
    )(x, w_slab)
    return out_pad[:, :OUT_DIM]


# --------------------------- pure-JAX reference -----------------------------
def critic_reference(params, x, perm):
    x = x[:, perm]
    mean = jnp.mean(x, axis=0, keepdims=True)
    var = jnp.mean((x - mean) ** 2, axis=0, keepdims=True)
    xn = (x - mean) / jnp.sqrt(var + BN_EPS)

    total_obs = TOTAL_OBS
    adv_obs = xn[:, :N_ADVERSARY * AD_OBS_LEN].reshape(x.shape[0], N_ADVERSARY, AD_OBS_LEN)
    adv_act = xn[:, total_obs:total_obs + ACT_LEN * N_ADVERSARY].reshape(
        x.shape[0], N_ADVERSARY, ACT_LEN)
    adv_x = jnp.concatenate([adv_obs, adv_act], axis=2)     # [B, n_adv, AD_IN]

    ao_start = N_ADVERSARY * AD_OBS_LEN
    agent_obs = xn[:, ao_start: ao_start + N_AGENT * AG_OBS_LEN]
    aa_start = total_obs + ACT_LEN * N_ADVERSARY
    agent_act = xn[:, aa_start: aa_start + ACT_LEN * N_AGENT]
    agent_x = jnp.concatenate([agent_obs, agent_act], axis=1)

    h = jnp.zeros((x.shape[0], H_RNN), jnp.float32)
    for t in range(N_ADVERSARY):
        h = jnp.tanh(adv_x[:, t] @ params["w_ih"].T + params["b_ih"]
                     + h @ params["w_hh"].T + params["b_hh"])
    feat = jnp.concatenate([agent_x, h], axis=1)
    h1 = jax.nn.relu(feat @ params["w1"].T + params["b1"])
    h2 = jax.nn.relu(h1 @ params["w2"].T + params["b2"])
    return h2 @ params["w3"].T + params["b3"]


# --------------------------------- main --------------------------------------
if __name__ == "__main__":
    key = jax.random.PRNGKey(0)
    kx, kp, ks = jax.random.split(key, 3)
    x = jax.random.normal(kx, (BATCH, INPUT_DIM), jnp.float32)
    params = init_params(kp)
    # Deterministic stand-in for torch.randperm(self.n_neurons) in forward().
    perm = jax.random.permutation(ks, INPUT_DIM)

    # One-time parameter packing (hoisted out of the per-call forward).
    w_slab = prepare_params(params)
    w_slab = jax.block_until_ready(w_slab)

    out = critic_forward(w_slab, x, perm)
    out = jax.block_until_ready(out)

    ref = critic_reference(params, x, perm)
    assert out.shape == (BATCH, OUT_DIM)
    assert jnp.allclose(out, ref, rtol=1e-4, atol=1e-4), (out, ref)
    print("KERNEL_OK")
</pallas_src>

<mosaic_0001>
module attributes {stable_mosaic.version = 11 : i64} {
  func.func @_critic_kernel(%arg0: memref<4x76xf32, #tpu.memory_space<vmem>>, %arg1: memref<80x896xf32, #tpu.memory_space<vmem>>, %arg2: memref<4x128xf32, #tpu.memory_space<vmem>>) attributes {dimension_semantics = [], scalar_prefetch = 0 : i64, scratch_operands = 0 : i64, tpu.core_type = #tpu.core_type<tc>} {
    %c0 = arith.constant 0 : index
    %c0_0 = arith.constant 0 : index
    %0 = vector.load %arg0[%c0, %c0_0] : memref<4x76xf32, #tpu.memory_space<vmem>>, vector<4x76xf32>
    %cst = arith.constant dense<0.000000e+00> : vector<76xf32>
    %1 = vector.multi_reduction <add>, %0, %cst [0] : vector<4x76xf32> to vector<76xf32>
    %2 = vector.shape_cast %1 : vector<76xf32> to vector<1x76xf32>
    %cst_1 = arith.constant 4.000000e+00 : f32
    %3 = vector.broadcast %cst_1 : f32 to vector<1x76xf32>
    %4 = arith.divf %2, %3 : vector<1x76xf32>
    %5 = vector.broadcast %4 : vector<1x76xf32> to vector<4x76xf32>
    %6 = arith.subf %0, %5 : vector<4x76xf32>
    %7 = arith.mulf %6, %6 : vector<4x76xf32>
    %cst_2 = arith.constant dense<0.000000e+00> : vector<76xf32>
    %8 = vector.multi_reduction <add>, %7, %cst_2 [0] : vector<4x76xf32> to vector<76xf32>
    %9 = vector.shape_cast %8 : vector<76xf32> to vector<1x76xf32>
    %cst_3 = arith.constant 4.000000e+00 : f32
    %10 = vector.broadcast %cst_3 : f32 to vector<1x76xf32>
    %11 = arith.divf %9, %10 : vector<1x76xf32>
    %12 = vector.broadcast %4 : vector<1x76xf32> to vector<4x76xf32>
    %13 = arith.subf %0, %12 : vector<4x76xf32>
    %cst_4 = arith.constant 9.99999974E-6 : f32
    %14 = vector.broadcast %cst_4 : f32 to vector<1x76xf32>
    %15 = arith.addf %11, %14 : vector<1x76xf32>
    %16 = math.rsqrt %15 : vector<1x76xf32>
    %17 = vector.broadcast %16 : vector<1x76xf32> to vector<4x76xf32>
    %18 = arith.mulf %13, %17 : vector<4x76xf32>
    %c0_5 = arith.constant 0 : index
    %c0_6 = arith.constant 0 : index
    %19 = vector.load %arg1[%c0_5, %c0_6] : memref<80x896xf32, #tpu.memory_space<vmem>>, vector<76x288xf32>
    %cst_7 = arith.constant dense<0.000000e+00> : vector<4x288xf32>
    %20 = tpu.matmul %18, %19, %cst_7 {dimension_numbers = #tpu.dot_dimension_numbers<[1], [0], [0], [1], [0, 0, 1, 1], [], []>} : vector<4x76xf32>, vector<76x288xf32>, vector<4x288xf32> -> vector<4x288xf32>
    %c76 = arith.constant 76 : index
    %c0_8 = arith.constant 0 : index
    %21 = vector.load %arg1[%c76, %c0_8] : memref<80x896xf32, #tpu.memory_space<vmem>>, vector<1x40xf32>
    %22 = vector.extract_strided_slice %20 {offsets = [0, 0], sizes = [4, 40], strides = [1, 1]} : vector<4x288xf32> to vector<4x40xf32>
    %23 = vector.broadcast %21 : vector<1x40xf32> to vector<4x40xf32>
    %24 = arith.addf %22, %23 : vector<4x40xf32>
    %25 = math.tanh %24 : vector<4x40xf32>
    %26 = vector.extract_strided_slice %20 {offsets = [0, 128], sizes = [4, 40], strides = [1, 1]} : vector<4x288xf32> to vector<4x40xf32>
    %c0_9 = arith.constant 0 : index
    %c384 = arith.constant 384 : index
    %27 = vector.load %arg1[%c0_9, %c384] : memref<80x896xf32, #tpu.memory_space<vmem>>, vector<40x40xf32>
    %cst_10 = arith.constant dense<0.000000e+00> : vector<4x40xf32>
    %28 = tpu.matmul %25, %27, %cst_10 {dimension_numbers = #tpu.dot_dimension_numbers<[1], [0], [0], [1], [0, 0, 1, 1], [], []>} : vector<4x40xf32>, vector<40x40xf32>, vector<4x40xf32> -> vector<4x40xf32>
    %29 = arith.addf %26, %28 : vector<4x40xf32>
    %30 = vector.broadcast %21 : vector<1x40xf32> to vector<4x40xf32>
    %31 = arith.addf %29, %30 : vector<4x40xf32>
    %32 = math.tanh %31 : vector<4x40xf32>
    %c76_11 = arith.constant 76 : index
    %c256 = arith.constant 256 : index
    %33 = vector.load %arg1[%c76_11, %c256] : memref<80x896xf32, #tpu.memory_space<vmem>>, vector<1x32xf32>
    %34 = vector.extract_strided_slice %20 {offsets = [0, 256], sizes = [4, 32], strides = [1, 1]} : vector<4x288xf32> to vector<4x32xf32>
    %c0_12 = arith.constant 0 : index
    %c512 = arith.constant 512 : index
    %35 = vector.load %arg1[%c0_12, %c512] : memref<80x896xf32, #tpu.memory_space<vmem>>, vector<40x32xf32>
    %cst_13 = arith.constant dense<0.000000e+00> : vector<4x32xf32>
    %36 = tpu.matmul %32, %35, %cst_13 {dimension_numbers = #tpu.dot_dimension_numbers<[1], [0], [0], [1], [0, 0, 1, 1], [], []>} : vector<4x40xf32>, vector<40x32xf32>, vector<4x32xf32> -> vector<4x32xf32>
    %37 = arith.addf %34, %36 : vector<4x32xf32>
    %38 = vector.broadcast %33 : vector<1x32xf32> to vector<4x32xf32>
    %39 = arith.addf %37, %38 : vector<4x32xf32>
    %cst_14 = arith.constant 0.000000e+00 : f32
    %40 = vector.broadcast %cst_14 : f32 to vector<4x32xf32>
    %41 = arith.maximumf %39, %40 : vector<4x32xf32>
    %c76_15 = arith.constant 76 : index
    %c640 = arith.constant 640 : index
    %42 = vector.load %arg1[%c76_15, %c640] : memref<80x896xf32, #tpu.memory_space<vmem>>, vector<1x32xf32>
    %c0_16 = arith.constant 0 : index
    %c640_17 = arith.constant 640 : index
    %43 = vector.load %arg1[%c0_16, %c640_17] : memref<80x896xf32, #tpu.memory_space<vmem>>, vector<32x32xf32>
    %cst_18 = arith.constant dense<0.000000e+00> : vector<4x32xf32>
    %44 = tpu.matmul %41, %43, %cst_18 {dimension_numbers = #tpu.dot_dimension_numbers<[1], [0], [0], [1], [0, 0, 1, 1], [], []>} : vector<4x32xf32>, vector<32x32xf32>, vector<4x32xf32> -> vector<4x32xf32>
    %45 = vector.broadcast %42 : vector<1x32xf32> to vector<4x32xf32>
    %46 = arith.addf %44, %45 : vector<4x32xf32>
    %cst_19 = arith.constant 0.000000e+00 : f32
    %47 = vector.broadcast %cst_19 : f32 to vector<4x32xf32>
    %48 = arith.maximumf %46, %47 : vector<4x32xf32>
    %c76_20 = arith.constant 76 : index
    %c768 = arith.constant 768 : index
    %49 = vector.load %arg1[%c76_20, %c768] : memref<80x896xf32, #tpu.memory_space<vmem>>, vector<1x128xf32>
    %c0_21 = arith.constant 0 : index
    %c768_22 = arith.constant 768 : index
    %50 = vector.load %arg1[%c0_21, %c768_22] : memref<80x896xf32, #tpu.memory_space<vmem>>, vector<32x128xf32>
    %cst_23 = arith.constant dense<0.000000e+00> : vector<4x128xf32>
    %51 = tpu.matmul %48, %50, %cst_23 {dimension_numbers = #tpu.dot_dimension_numbers<[1], [0], [0], [1], [0, 0, 1, 1], [], []>} : vector<4x32xf32>, vector<32x128xf32>, vector<4x128xf32> -> vector<4x128xf32>
    %52 = vector.broadcast %49 : vector<1x128xf32> to vector<4x128xf32>
    %53 = arith.addf %51, %52 : vector<4x128xf32>
    %c0_24 = arith.constant 0 : index
    %c0_25 = arith.constant 0 : index
    %54 = vector.load %arg2[%c0_24, %c0_25] : memref<4x128xf32, #tpu.memory_space<vmem>>, vector<4x128xf32>
    tpu.vector_store %arg2[%c0_24, %c0_25], %53 {strides = array<i32>} : memref<4x128xf32, #tpu.memory_space<vmem>>, vector<4x128xf32>,
    return
  }
}

</mosaic_0001>

<llo_original>
// kernel: tpu_custom_call.1
$region0: #{tpu_custom_call.1}
  #allocation0 [shape = 'u32[]', space=smem, size = 0x4, offset = 0x4, fixed_abs, tag = 'smem constant byte address 0x4 - core index']
  #allocation1 [shape = 'u32[144,128]{1,0:T(1,128)}', space=vmem, size = 0x12000, scoped, tag = 'internal scratch']
  %s0 = inlined_call_operand.hbm [shape: f32[4,76], index: 0, kind: input, shape index: {}]
  %s1 = inlined_call_operand.hbm [shape: f32[80,896], index: 1, kind: input, shape index: {}]
  %s2 = inlined_call_operand.hbm [shape: f32[4,128], index: 2, kind: output, shape index: {}]
  %s3 = sld [smem:[#allocation0]]
  $region26: #{tpu_custom_call.1} parent=0
    _
  %s5 = ssub.s32 1, %s3
  %s6 = scalar_select 0, %s5, %s3
  $region1: #{tpu_custom_call.1} parent=0
    #allocation2 [shape = 'u8[2048]{0}', space=vmem, size = 0x800, scoped, tag = 'input window, operand 0, single buffered']
    #allocation3 [shape = 's32[1]{0}', space=sflag, size = 0x4, scoped, tag = 'scoped memory for tpu_custom_call.1']
    #allocation4 [shape = 's32[1]{0}', space=sflag, size = 0x4, scoped, tag = 'scoped memory for tpu_custom_call.1']
    #allocation5 [shape = 'u8[286720]{0}', space=vmem, size = 0x46000, scoped, tag = 'input window, operand 1, single buffered']
    #allocation6 [shape = 's32[1]{0}', space=sflag, size = 0x4, scoped, tag = 'scoped memory for tpu_custom_call.1']
    #allocation7 [shape = 'u8[2048]{0}', space=vmem, size = 0x800, scoped, tag = 'output window, operand 0, single buffered']
    %7 = vsyncpa [#allocation3], 0
    %8 = vsyncpa [#allocation6], 0
    %9 = vsyncpa [#allocation4], 0
    // Predicated region
    $region2: #{tpu_custom_call.1} parent=1 // pred_check
      _
    $region3: #{tpu_custom_call.1} parent=1 // pred_check_branch
      %11 = sbr.rel (0) target = $region5
    $region4: #{tpu_custom_call.1} parent=1 // pred_region
      %s13 = ssub.s32 64, 64
      %14 = vsyncadd [#allocation3], %s13
      %s16 = sshll.u32 [#allocation2], 4
      %s17 = int_to_ptr.vmem [resolvable:$true] %s16
      %19 = dma.hbm_to_vmem [thread:$0]  %s0, 64, %s17, [#allocation3]
    $region5: #{tpu_custom_call.1} parent=1 // pred_fallthru
      _
    // Predicated region
    $region6: #{tpu_custom_call.1} parent=1 // pred_check
      _
    $region7: #{tpu_custom_call.1} parent=1 // pred_check_branch
      %21 = sbr.rel (0) target = $region9
    $region8: #{tpu_custom_call.1} parent=1 // pred_region
      %s23 = ssub.s32 8960, 8960
      %24 = vsyncadd [#allocation6], %s23
      %s25 = sshll.u32 [#allocation5], 4
      %s26 = int_to_ptr.vmem [resolvable:$true] %s25
      %31 = dma.hbm_to_vmem [thread:$0]  %s1, 8960, %s26, [#allocation6], 896, 896, 56
    $region9: #{tpu_custom_call.1} parent=1 // pred_fallthru
      _
    // Predicated region
    $region10: #{tpu_custom_call.1} parent=1 // pred_check
      _
    $region11: #{tpu_custom_call.1} parent=1 // pred_check_branch
      %33 = sbr.rel (0) target = $region13
    $region12: #{tpu_custom_call.1} parent=1 // pred_region
      %34 = dma.done [#allocation3], 64
    $region13: #{tpu_custom_call.1} parent=1 // pred_fallthru
      _
    // Predicated region
    $region14: #{tpu_custom_call.1} parent=1 // pred_check
      _
    $region15: #{tpu_custom_call.1} parent=1 // pred_check_branch
      %36 = sbr.rel (0) target = $region17
    $region16: #{tpu_custom_call.1} parent=1 // pred_region
      %37 = dma.done [#allocation6], 8960
    $region17: #{tpu_custom_call.1} parent=1 // pred_fallthru
      _
    %v38 = vld [vmem:[#allocation2] sm:$0xf]
    %vm39 = vcmask 617472
    %v40 = vsel %vm39, %v38, 0.0
    %v41 = vrot.slane %v40, 4
    %v42 = vadd.f32 %v40, %v41
    %v43 = vrot.slane %v42, 2
    %v44 = vadd.f32 %v42, %v43
    %v45 = vrot.slane %v44, 1
    %v46 = vadd.f32 %v44, %v45
    %v47 = vrcp.pop 4.0
    %v48 = vmul.f32 %v46, %v47
    %v49 = vsub.f32 %v38, %v48
    %v50 = vmul.f32 %v49, %v49
    %v51 = vsel %vm39, %v50, 0.0
    %v52 = vrot.slane %v51, 4
    %v53 = vadd.f32 %v51, %v52
    %v54 = vrot.slane %v53, 2
    %v55 = vadd.f32 %v53, %v54
    %v56 = vrot.slane %v55, 1
    %v57 = vadd.f32 %v55, %v56
    %v58 = vmul.f32 %v57, %v47
    %v59 = vadd.f32 %v58, 1e-05
    %v60 = vrsqrt.pop %v59
    %v61 = vmul.f32 %v49, %v60
    %v62 = vld [vmem:[#allocation5] sm:$0xff]
    %v63 = vld [vmem:[#allocation5 + $0x8] sm:$0xff]
    %v64 = vld [vmem:[#allocation5 + $0x10] sm:$0xff]
    %v65 = vld [vmem:[#allocation5 + $0x38] sm:$0xff]
    %v66 = vld [vmem:[#allocation5 + $0x40] sm:$0xff]
    %v67 = vld [vmem:[#allocation5 + $0x48] sm:$0xff]
    %v68 = vld [vmem:[#allocation5 + $0x70] sm:$0xff]
    %v69 = vld [vmem:[#allocation5 + $0x78] sm:$0xff]
    %v70 = vld [vmem:[#allocation5 + $0x80] sm:$0xff]
    %v71 = vld [vmem:[#allocation5 + $0xa8] sm:$0xff]
    %v72 = vld [vmem:[#allocation5 + $0xb0] sm:$0xff]
    %v73 = vld [vmem:[#allocation5 + $0xb8] sm:$0xff]
    %v74 = vld [vmem:[#allocation5 + $0xe0] sm:$0xff]
    %v75 = vld [vmem:[#allocation5 + $0xe8] sm:$0xff]
    %v76 = vld [vmem:[#allocation5 + $0xf0] sm:$0xff]
    %v77 = vld [vmem:[#allocation5 + $0x118] sm:$0xff]
    %v78 = vld [vmem:[#allocation5 + $0x120] sm:$0xff]
    %v79 = vld [vmem:[#allocation5 + $0x128] sm:$0xff]
    %v80 = vld [vmem:[#allocation5 + $0x150] sm:$0xff]
    %v81 = vld [vmem:[#allocation5 + $0x158] sm:$0xff]
    %v82 = vld [vmem:[#allocation5 + $0x160] sm:$0xff]
    %v83 = vld [vmem:[#allocation5 + $0x188] sm:$0xff]
    %v84 = vld [vmem:[#allocation5 + $0x190] sm:$0xff]
    %v85 = vld [vmem:[#allocation5 + $0x198] sm:$0xff]
    %v86 = vld [vmem:[#allocation5 + $0x1c0] sm:$0xff]
    %v87 = vld [vmem:[#allocation5 + $0x1c8] sm:$0xff]
    %v88 = vld [vmem:[#allocation5 + $0x1d0] sm:$0xff]
    %v89 = vld [vmem:[#allocation5 + $0x1f8] sm:$0xf]
    %v90 = vld [vmem:[#allocation5 + $0x200] sm:$0xf]
    %v91 = vld [vmem:[#allocation5 + $0x208] sm:$0xf]
    %vm92 = vcmask 621568
    %v94 = vsel %vm92, %v61, 0
    %vm96 = vcmask 1043456
    %v98 = vsel %vm96, %v89, 0
    %v101 = vsel %vm96, %v90, 0
    %v104 = vsel %vm96, %v91, 0
    %106 = vmatprep.subr.mxu0 %v63
    %107 = vmatpush1.msra.mxu0 %v62
    %108 = vmatprep.subr.mxu0 %v66
    %109 = vmatpush1.msra.mxu0 %v65
    %110 = vmatprep.subr.mxu0 %v69
    %111 = vmatpush1.msra.mxu0 %v68
    %112 = vmatprep.subr.mxu0 %v72
    %113 = vmatpush1.msra.mxu0 %v71
    %114 = vmatprep.subr.mxu0 %v75
    %115 = vmatpush1.msra.mxu0 %v74
    %116 = vmatprep.subr.mxu0 %v78
    %117 = vmatpush1.msra.mxu0 %v77
    %118 = vmatprep.subr.mxu0 %v81
    %119 = vmatpush1.msra.mxu0 %v80
    %120 = vmatprep.subr.mxu0 %v84
    %121 = vmatpush1.msra.mxu0 %v83
    %122 = vmatprep.subr.mxu0 %v87
    %123 = vmatpush1.msra.mxu0 %v86
    %124 = vmatprep.subr.mxu0 %v101
    %125 = vmatpush1.msra.mxu0 %v98
    %126 = vmatprep.subr.mxu0 0.0
    %127 = vmatpush1.msra.mxu0 0.0
    %128 = vmatprep.subr.mxu0 0.0
    %129 = vmatpush1.msra.mxu0 0.0
    %130 = vmatprep.subr.mxu0 0.0
    %131 = vmatpush1.msra.mxu0 0.0
    %132 = vmatprep.subr.mxu0 0.0
    %133 = vmatpush1.msra.mxu0 0.0
    %134 = vmatprep.subr.mxu0 0.0
    %135 = vmatpush1.msra.mxu0 0.0
    %136 = vmatprep.subr.mxu0 0.0
    %137 = vmatpush1.msra.mxu0 0.0
    %138 = vmatprep.subr.mxu0 0.0
    %139 = vmatpush1.msra.mxu0 0.0
    %140 = vmatprep.subr.mxu0 0.0
    %141 = vmatpush1.msra.mxu0 0.0
    %142 = vmatprep.subr.mxu0 0.0
    %143 = vmatpush1.msra.mxu0 0.0
    %144 = vmatprep.subr.mxu0 0.0
    %145 = vmatpush1.msra.mxu0 0.0
    %146 = vmatprep.subr.mxu0 0.0
    %147 = vmatpush1.msra.mxu0 0.0
    %148 = vmatprep.subr.mxu0 0.0
    %149 = vmatpush1.msra.mxu0 0.0
    %150 = vmatprep.subr.mxu0 0.0
    %151 = vmatpush1.msra.mxu0 0.0
    %152 = vmatprep.subr.mxu0 0.0
    %153 = vmatpush1.msra.mxu0 0.0
    %154 = vmatprep.subr.mxu0 0.0
    %155 = vmatpush1.msra.mxu0 0.0
    %156 = vmatprep.subr.mxu0 0.0
    %157 = vmatpush1.msra.mxu0 0.0
    %158 = vmatprep.subr.mxu0 0.0
    %159 = vmatpush1.msra.mxu0 0.0
    %160 = vmatprep.subr.mxu0 0.0
    %161 = vmatpush1.msra.mxu0 0.0
    %162 = vmatprep.subr.mxu0 0.0
    %163 = vmatpush1.msra.mxu0 0.0
    %164 = vmatprep.subr.mxu0 0.0
    %165 = vmatpush1.msra.mxu0 0.0
    %166 = vmatprep.subr.mxu0 0.0
    %167 = vmatpush1.msra.mxu0 0.0
    %168 = vmatprep.subr.mxu0 0.0
    %169 = vmatpush1.msra.mxu0 0.0
    %170 = vmatprep.mubr.f32.mxu0 0.0
    %171 = vmatmul.mubr.f32.gmra.mrb[0].mxu0 %v94
    %v172 = vpop.f32.mrb[0].mxu0
    %v173 = vadd.f32 0.0, %v172
    %v174 = vpop.f32.mrb[0].mxu0
    %v175 = vadd.f32 0.0, %v174
    %176 = vdwg.mxu0
    %177 = vmatprep.subr.mxu0 0.0
    %178 = vmatpush1.msra.mxu0 %v64
    %179 = vmatprep.subr.mxu0 0.0
    %180 = vmatpush1.msra.mxu0 %v67
    %181 = vmatprep.subr.mxu0 0.0
    %182 = vmatpush1.msra.mxu0 %v70
    %183 = vmatprep.subr.mxu0 0.0
    %184 = vmatpush1.msra.mxu0 %v73
    %185 = vmatprep.subr.mxu0 0.0
    %186 = vmatpush1.msra.mxu0 %v76
    %187 = vmatprep.subr.mxu0 0.0
    %188 = vmatpush1.msra.mxu0 %v79
    %189 = vmatprep.subr.mxu0 0.0
    %190 = vmatpush1.msra.mxu0 %v82
    %191 = vmatprep.subr.mxu0 0.0
    %192 = vmatpush1.msra.mxu0 %v85
    %193 = vmatprep.subr.mxu0 0.0
    %194 = vmatpush1.msra.mxu0 %v88
    %195 = vmatprep.subr.mxu0 0.0
    %196 = vmatpush1.msra.mxu0 %v104
    %197 = vmatprep.subr.mxu0 0.0
    %198 = vmatpush1.msra.mxu0 0.0
    %199 = vmatprep.subr.mxu0 0.0
    %200 = vmatpush1.msra.mxu0 0.0
    %201 = vmatprep.subr.mxu0 0.0
    %202 = vmatpush1.msra.mxu0 0.0
    %203 = vmatprep.subr.mxu0 0.0
    %204 = vmatpush1.msra.mxu0 0.0
    %205 = vmatprep.subr.mxu0 0.0
    %206 = vmatpush1.msra.mxu0 0.0
    %207 = vmatprep.subr.mxu0 0.0
    %208 = vmatpush1.msra.mxu0 0.0
    %209 = vmatprep.subr.mxu0 0.0
    %210 = vmatpush1.msra.mxu0 0.0
    %211 = vmatprep.subr.mxu0 0.0
    %212 = vmatpush1.msra.mxu0 0.0
    %213 = vmatprep.subr.mxu0 0.0
    %214 = vmatpush1.msra.mxu0 0.0
    %215 = vmatprep.subr.mxu0 0.0
    %216 = vmatpush1.msra.mxu0 0.0
    %217 = vmatprep.subr.mxu0 0.0
    %218 = vmatpush1.msra.mxu0 0.0
    %219 = vmatprep.subr.mxu0 0.0
    %220 = vmatpush1.msra.mxu0 0.0
    %221 = vmatprep.subr.mxu0 0.0
    %222 = vmatpush1.msra.mxu0 0.0
    %223 = vmatprep.subr.mxu0 0.0
    %224 = vmatpush1.msra.mxu0 0.0
    %225 = vmatprep.subr.mxu0 0.0
    %226 = vmatpush1.msra.mxu0 0.0
    %227 = vmatprep.subr.mxu0 0.0
    %228 = vmatpush1.msra.mxu0 0.0
    %229 = vmatprep.subr.mxu0 0.0
    %230 = vmatpush1.msra.mxu0 0.0
    %231 = vmatprep.subr.mxu0 0.0
    %232 = vmatpush1.msra.mxu0 0.0
    %233 = vmatprep.subr.mxu0 0.0
    %234 = vmatpush1.msra.mxu0 0.0
    %235 = vmatprep.subr.mxu0 0.0
    %236 = vmatpush1.msra.mxu0 0.0
    %237 = vmatprep.subr.mxu0 0.0
    %238 = vmatpush1.msra.mxu0 0.0
    %239 = vmatprep.subr.mxu0 0.0
    %240 = vmatpush1.msra.mxu0 0.0
    %241 = vmatprep.mubr.f32.mxu0 0.0
    %242 = vmatmul.mubr.f32.gmra.mrb[0].mxu0 %v94
    %v243 = vpop.f32.mrb[0].mxu0
    %v244 = vadd.f32 0.0, %v243
    %v245 = vpop.f32.mrb[0].mxu0
    %246 = vdwg.mxu0
    %v247 = vld [vmem:[#allocation5 + $0x1fc] ss:$0 sm:$0xff]
    %v248 = vadd.f32 %v173, %v247
    %v249 = vtanh.pop %v248
    %v250 = vld [vmem:[#allocation5 + $0x18] sm:$0xff]
    %v251 = vld [vmem:[#allocation5 + $0x50] sm:$0xff]
    %v252 = vld [vmem:[#allocation5 + $0x88] sm:$0xff]
    %v253 = vld [vmem:[#allocation5 + $0xc0] sm:$0xff]
    %v254 = vld [vmem:[#allocation5 + $0xf8] sm:$0xff]
    %vm255 = vcmask 326656
    %v257 = vsel %vm255, %v249, 0
    %259 = vmatprep.subr.mxu0 0.0
    %260 = vmatpush1.msra.mxu0 %v250
    %261 = vmatprep.subr.mxu0 0.0
    %262 = vmatpush1.msra.mxu0 %v251
    %263 = vmatprep.subr.mxu0 0.0
    %264 = vmatpush1.msra.mxu0 %v252
    %265 = vmatprep.subr.mxu0 0.0
    %266 = vmatpush1.msra.mxu0 %v253
    %267 = vmatprep.subr.mxu0 0.0
    %268 = vmatpush1.msra.mxu0 %v254
    %269 = vmatprep.subr.mxu0 0.0
    %270 = vmatpush1.msra.mxu0 0.0
    %271 = vmatprep.subr.mxu0 0.0
    %272 = vmatpush1.msra.mxu0 0.0
    %273 = vmatprep.subr.mxu0 0.0
    %274 = vmatpush1.msra.mxu0 0.0
    %275 = vmatprep.subr.mxu0 0.0
    %276 = vmatpush1.msra.mxu0 0.0
    %277 = vmatprep.subr.mxu0 0.0
    %278 = vmatpush1.msra.mxu0 0.0
    %279 = vmatprep.subr.mxu0 0.0
    %280 = vmatpush1.msra.mxu0 0.0
    %281 = vmatprep.subr.mxu0 0.0
    %282 = vmatpush1.msra.mxu0 0.0
    %283 = vmatprep.subr.mxu0 0.0
    %284 = vmatpush1.msra.mxu0 0.0
    %285 = vmatprep.subr.mxu0 0.0
    %286 = vmatpush1.msra.mxu0 0.0
    %287 = vmatprep.subr.mxu0 0.0
    %288 = vmatpush1.msra.mxu0 0.0
    %289 = vmatprep.subr.mxu0 0.0
    %290 = vmatpush1.msra.mxu0 0.0
    %291 = vmatprep.subr.mxu0 0.0
    %292 = vmatpush1.msra.mxu0 0.0
    %293 = vmatprep.subr.mxu0 0.0
    %294 = vmatpush1.msra.mxu0 0.0
    %295 = vmatprep.subr.mxu0 0.0
    %296 = vmatpush1.msra.mxu0 0.0
    %297 = vmatprep.subr.mxu0 0.0
    %298 = vmatpush1.msra.mxu0 0.0
    %299 = vmatprep.subr.mxu0 0.0
    %300 = vmatpush1.msra.mxu0 0.0
    %301 = vmatprep.subr.mxu0 0.0
    %302 = vmatpush1.msra.mxu0 0.0
    %303 = vmatprep.subr.mxu0 0.0
    %304 = vmatpush1.msra.mxu0 0.0
    %305 = vmatprep.subr.mxu0 0.0
    %306 = vmatpush1.msra.mxu0 0.0
    %307 = vmatprep.subr.mxu0 0.0
    %308 = vmatpush1.msra.mxu0 0.0
    %309 = vmatprep.subr.mxu0 0.0
    %310 = vmatpush1.msra.mxu0 0.0
    %311 = vmatprep.subr.mxu0 0.0
    %312 = vmatpush1.msra.mxu0 0.0
    %313 = vmatprep.subr.mxu0 0.0
    %314 = vmatpush1.msra.mxu0 0.0
    %315 = vmatprep.subr.mxu0 0.0
    %316 = vmatpush1.msra.mxu0 0.0
    %317 = vmatprep.subr.mxu0 0.0
    %318 = vmatpush1.msra.mxu0 0.0
    %319 = vmatprep.subr.mxu0 0.0
    %320 = vmatpush1.msra.mxu0 0.0
    %321 = vmatprep.subr.mxu0 0.0
    %322 = vmatpush1.msra.mxu0 0.0
    %323 = vmatprep.mubr.f32.mxu0 0.0
    %324 = vmatmul.mubr.f32.gmra.mrb[0].mxu0 %v257
    %v325 = vpop.f32.mrb[0].mxu0
    %v326 = vadd.f32 0.0, %v325
    %v327 = vpop.f32.mrb[0].mxu0
    %328 = vdwg.mxu0
    %v329 = vadd.f32 %v175, %v326
    %v330 = vadd.f32 %v329, %v247
    %v331 = vtanh.pop %v330
    %v332 = vld [vmem:[#allocation5 + $0x20c] ss:$0 sm:$0xff]
    %v333 = vld [vmem:[#allocation5 + $0x20] sm:$0xff]
    %v334 = vld [vmem:[#allocation5 + $0x58] sm:$0xff]
    %v335 = vld [vmem:[#allocation5 + $0x90] sm:$0xff]
    %v336 = vld [vmem:[#allocation5 + $0xc8] sm:$0xff]
    %v337 = vld [vmem:[#allocation5 + $0x100] sm:$0xff]
    %v339 = vsel %vm255, %v331, 0
    %341 = vmatprep.subr.mxu0 0.0
    %342 = vmatpush1.msra.mxu0 %v333
    %343 = vmatprep.subr.mxu0 0.0
    %344 = vmatpush1.msra.mxu0 %v334
    %345 = vmatprep.subr.mxu0 0.0
    %346 = vmatpush1.msra.mxu0 %v335
    %347 = vmatprep.subr.mxu0 0.0
    %348 = vmatpush1.msra.mxu0 %v336
    %349 = vmatprep.subr.mxu0 0.0
    %350 = vmatpush1.msra.mxu0 %v337
    %351 = vmatprep.subr.mxu0 0.0
    %352 = vmatpush1.msra.mxu0 0.0
    %353 = vmatprep.subr.mxu0 0.0
    %354 = vmatpush1.msra.mxu0 0.0
    %355 = vmatprep.subr.mxu0 0.0
    %356 = vmatpush1.msra.mxu0 0.0
    %357 = vmatprep.subr.mxu0 0.0
    %358 = vmatpush1.msra.mxu0 0.0
    %359 = vmatprep.subr.mxu0 0.0
    %360 = vmatpush1.msra.mxu0 0.0
    %361 = vmatprep.subr.mxu0 0.0
    %362 = vmatpush1.msra.mxu0 0.0
    %363 = vmatprep.subr.mxu0 0.0
    %364 = vmatpush1.msra.mxu0 0.0
    %365 = vmatprep.subr.mxu0 0.0
    %366 = vmatpush1.msra.mxu0 0.0
    %367 = vmatprep.subr.mxu0 0.0
    %368 = vmatpush1.msra.mxu0 0.0
    %369 = vmatprep.subr.mxu0 0.0
    %370 = vmatpush1.msra.mxu0 0.0
    %371 = vmatprep.subr.mxu0 0.0
    %372 = vmatpush1.msra.mxu0 0.0
    %373 = vmatprep.subr.mxu0 0.0
    %374 = vmatpush1.msra.mxu0 0.0
    %375 = vmatprep.subr.mxu0 0.0
    %376 = vmatpush1.msra.mxu0 0.0
    %377 = vmatprep.subr.mxu0 0.0
    %378 = vmatpush1.msra.mxu0 0.0
    %379 = vmatprep.subr.mxu0 0.0
    %380 = vmatpush1.msra.mxu0 0.0
    %381 = vmatprep.subr.mxu0 0.0
    %382 = vmatpush1.msra.mxu0 0.0
    %383 = vmatprep.subr.mxu0 0.0
    %384 = vmatpush1.msra.mxu0 0.0
    %385 = vmatprep.subr.mxu0 0.0
    %386 = vmatpush1.msra.mxu0 0.0
    %387 = vmatprep.subr.mxu0 0.0
    %388 = vmatpush1.msra.mxu0 0.0
    %389 = vmatprep.subr.mxu0 0.0
    %390 = vmatpush1.msra.mxu0 0.0
    %391 = vmatprep.subr.mxu0 0.0
    %392 = vmatpush1.msra.mxu0 0.0
    %393 = vmatprep.subr.mxu0 0.0
    %394 = vmatpush1.msra.mxu0 0.0
    %395 = vmatprep.subr.mxu0 0.0
    %396 = vmatpush1.msra.mxu0 0.0
    %397 = vmatprep.subr.mxu0 0.0
    %398 = vmatpush1.msra.mxu0 0.0
    %399 = vmatprep.subr.mxu0 0.0
    %400 = vmatpush1.msra.mxu0 0.0
    %401 = vmatprep.subr.mxu0 0.0
    %402 = vmatpush1.msra.mxu0 0.0
    %403 = vmatprep.subr.mxu0 0.0
    %404 = vmatpush1.msra.mxu0 0.0
    %405 = vmatprep.mubr.f32.mxu0 0.0
    %406 = vmatmul.mubr.f32.gmra.mrb[0].mxu0 %v339
    %v407 = vpop.f32.mrb[0].mxu0
    %v408 = vadd.f32 0.0, %v407
    %v409 = vpop.f32.mrb[0].mxu0
    %410 = vdwg.mxu0
    %v411 = vadd.f32 %v244, %v408
    %v412 = vadd.f32 %v411, %v332
    %v413 = vmax.f32 %v412, 0.0
    %v414 = vld [vmem:[#allocation5 + $0x224] ss:$0 sm:$0xff]
    %v415 = vld [vmem:[#allocation5 + $0x28] sm:$0xff]
    %v416 = vld [vmem:[#allocation5 + $0x60] sm:$0xff]
    %v417 = vld [vmem:[#allocation5 + $0x98] sm:$0xff]
    %v418 = vld [vmem:[#allocation5 + $0xd0] sm:$0xff]
    %vm419 = vcmask 261120
    %v421 = vsel %vm419, %v413, 0
    %423 = vmatprep.subr.mxu0 0.0
    %424 = vmatpush1.msra.mxu0 %v415
    %425 = vmatprep.subr.mxu0 0.0
    %426 = vmatpush1.msra.mxu0 %v416
    %427 = vmatprep.subr.mxu0 0.0
    %428 = vmatpush1.msra.mxu0 %v417
    %429 = vmatprep.subr.mxu0 0.0
    %430 = vmatpush1.msra.mxu0 %v418
    %431 = vmatprep.subr.mxu0 0.0
    %432 = vmatpush1.msra.mxu0 0.0
    %433 = vmatprep.subr.mxu0 0.0
    %434 = vmatpush1.msra.mxu0 0.0
    %435 = vmatprep.subr.mxu0 0.0
    %436 = vmatpush1.msra.mxu0 0.0
    %437 = vmatprep.subr.mxu0 0.0
    %438 = vmatpush1.msra.mxu0 0.0
    %439 = vmatprep.subr.mxu0 0.0
    %440 = vmatpush1.msra.mxu0 0.0
    %441 = vmatprep.subr.mxu0 0.0
    %442 = vmatpush1.msra.mxu0 0.0
    %443 = vmatprep.subr.mxu0 0.0
    %444 = vmatpush1.msra.mxu0 0.0
    %445 = vmatprep.subr.mxu0 0.0
    %446 = vmatpush1.msra.mxu0 0.0
    %447 = vmatprep.subr.mxu0 0.0
    %448 = vmatpush1.msra.mxu0 0.0
    %449 = vmatprep.subr.mxu0 0.0
    %450 = vmatpush1.msra.mxu0 0.0
    %451 = vmatprep.subr.mxu0 0.0
    %452 = vmatpush1.msra.mxu0 0.0
    %453 = vmatprep.subr.mxu0 0.0
    %454 = vmatpush1.msra.mxu0 0.0
    %455 = vmatprep.subr.mxu0 0.0
    %456 = vmatpush1.msra.mxu0 0.0
    %457 = vmatprep.subr.mxu0 0.0
    %458 = vmatpush1.msra.mxu0 0.0
    %459 = vmatprep.subr.mxu0 0.0
    %460 = vmatpush1.msra.mxu0 0.0
    %461 = vmatprep.subr.mxu0 0.0
    %462 = vmatpush1.msra.mxu0 0.0
    %463 = vmatprep.subr.mxu0 0.0
    %464 = vmatpush1.msra.mxu0 0.0
    %465 = vmatprep.subr.mxu0 0.0
    %466 = vmatpush1.msra.mxu0 0.0
    %467 = vmatprep.subr.mxu0 0.0
    %468 = vmatpush1.msra.mxu0 0.0
    %469 = vmatprep.subr.mxu0 0.0
    %470 = vmatpush1.msra.mxu0 0.0
    %471 = vmatprep.subr.mxu0 0.0
    %472 = vmatpush1.msra.mxu0 0.0
    %473 = vmatprep.subr.mxu0 0.0
    %474 = vmatpush1.msra.mxu0 0.0
    %475 = vmatprep.subr.mxu0 0.0
    %476 = vmatpush1.msra.mxu0 0.0
    %477 = vmatprep.subr.mxu0 0.0
    %478 = vmatpush1.msra.mxu0 0.0
    %479 = vmatprep.subr.mxu0 0.0
    %480 = vmatpush1.msra.mxu0 0.0
    %481 = vmatprep.subr.mxu0 0.0
    %482 = vmatpush1.msra.mxu0 0.0
    %483 = vmatprep.subr.mxu0 0.0
    %484 = vmatpush1.msra.mxu0 0.0
    %485 = vmatprep.subr.mxu0 0.0
    %486 = vmatpush1.msra.mxu0 0.0
    %487 = vmatprep.mubr.f32.mxu0 0.0
    %488 = vmatmul.mubr.f32.gmra.mrb[0].mxu0 %v421
    %v489 = vpop.f32.mrb[0].mxu0
    %v490 = vadd.f32 %v414, %v489
    %v491 = vpop.f32.mrb[0].mxu0
    %492 = vdwg.mxu0
    %v493 = vmax.f32 %v490, 0.0
    %v494 = vld [vmem:[#allocation5 + $0x22c] ss:$0 sm:$0xff]
    %v495 = vld [vmem:[#allocation5 + $0x30] sm:$0xff]
    %v496 = vld [vmem:[#allocation5 + $0x68] sm:$0xff]
    %v497 = vld [vmem:[#allocation5 + $0xa0] sm:$0xff]
    %v498 = vld [vmem:[#allocation5 + $0xd8] sm:$0xff]
    %v500 = vsel %vm419, %v493, 0
    %502 = vmatprep.subr.mxu0 0.0
    %503 = vmatpush1.msra.mxu0 %v495
    %504 = vmatprep.subr.mxu0 0.0
    %505 = vmatpush1.msra.mxu0 %v496
    %506 = vmatprep.subr.mxu0 0.0
    %507 = vmatpush1.msra.mxu0 %v497
    %508 = vmatprep.subr.mxu0 0.0
    %509 = vmatpush1.msra.mxu0 %v498
    %510 = vmatprep.subr.mxu0 0.0
    %511 = vmatpush1.msra.mxu0 0.0
    %512 = vmatprep.subr.mxu0 0.0
    %513 = vmatpush1.msra.mxu0 0.0
    %514 = vmatprep.subr.mxu0 0.0
    %515 = vmatpush1.msra.mxu0 0.0
    %516 = vmatprep.subr.mxu0 0.0
    %517 = vmatpush1.msra.mxu0 0.0
    %518 = vmatprep.subr.mxu0 0.0
    %519 = vmatpush1.msra.mxu0 0.0
    %520 = vmatprep.subr.mxu0 0.0
    %521 = vmatpush1.msra.mxu0 0.0
    %522 = vmatprep.subr.mxu0 0.0
    %523 = vmatpush1.msra.mxu0 0.0
    %524 = vmatprep.subr.mxu0 0.0
    %525 = vmatpush1.msra.mxu0 0.0
    %526 = vmatprep.subr.mxu0 0.0
    %527 = vmatpush1.msra.mxu0 0.0
    %528 = vmatprep.subr.mxu0 0.0
    %529 = vmatpush1.msra.mxu0 0.0
    %530 = vmatprep.subr.mxu0 0.0
    %531 = vmatpush1.msra.mxu0 0.0
    %532 = vmatprep.subr.mxu0 0.0
    %533 = vmatpush1.msra.mxu0 0.0
    %534 = vmatprep.subr.mxu0 0.0
    %535 = vmatpush1.msra.mxu0 0.0
    %536 = vmatprep.subr.mxu0 0.0
    %537 = vmatpush1.msra.mxu0 0.0
    %538 = vmatprep.subr.mxu0 0.0
    %539 = vmatpush1.msra.mxu0 0.0
    %540 = vmatprep.subr.mxu0 0.0
    %541 = vmatpush1.msra.mxu0 0.0
    %542 = vmatprep.subr.mxu0 0.0
    %543 = vmatpush1.msra.mxu0 0.0
    %544 = vmatprep.subr.mxu0 0.0
    %545 = vmatpush1.msra.mxu0 0.0
    %546 = vmatprep.subr.mxu0 0.0
    %547 = vmatpush1.msra.mxu0 0.0
    %548 = vmatprep.subr.mxu0 0.0
    %549 = vmatpush1.msra.mxu0 0.0
    %550 = vmatprep.subr.mxu0 0.0
    %551 = vmatpush1.msra.mxu0 0.0
    %552 = vmatprep.subr.mxu0 0.0
    %553 = vmatpush1.msra.mxu0 0.0
    %554 = vmatprep.subr.mxu0 0.0
    %555 = vmatpush1.msra.mxu0 0.0
    %556 = vmatprep.subr.mxu0 0.0
    %557 = vmatpush1.msra.mxu0 0.0
    %558 = vmatprep.subr.mxu0 0.0
    %559 = vmatpush1.msra.mxu0 0.0
    %560 = vmatprep.subr.mxu0 0.0
    %561 = vmatpush1.msra.mxu0 0.0
    %562 = vmatprep.subr.mxu0 0.0
    %563 = vmatpush1.msra.mxu0 0.0
    %564 = vmatprep.subr.mxu0 0.0
    %565 = vmatpush1.msra.mxu0 0.0
    %566 = vmatprep.mubr.f32.mxu0 0.0
    %567 = vmatmul.mubr.f32.gmra.mrb[0].mxu0 %v500
    %v568 = vpop.f32.mrb[0].mxu0
    %v569 = vadd.f32 %v494, %v568
    %v570 = vpop.f32.mrb[0].mxu0
    %571 = vdwg.mxu0
    %572 = vst [vmem:[#allocation7] sm:$0xf] %v569
    // Predicated region
    $region18: #{tpu_custom_call.1} parent=1 // pred_check
      _
    $region19: #{tpu_custom_call.1} parent=1 // pred_check_branch
      %574 = sbr.rel (0) target = $region21
    $region20: #{tpu_custom_call.1} parent=1 // pred_region
      %s576 = ssub.s32 64, 64
      %577 = vsyncadd [#allocation4], %s576
      %s579 = sshll.u32 [#allocation7], 4
      %s580 = int_to_ptr.vmem [resolvable:$true] %s579
      %582 = dma.vmem_to_hbm [thread:$0]  %s580, 64, %s2, [#allocation4]
    $region21: #{tpu_custom_call.1} parent=1 // pred_fallthru
      _
    // Predicated region
    $region22: #{tpu_custom_call.1} parent=1 // pred_check
      _
    $region23: #{tpu_custom_call.1} parent=1 // pred_check_branch
      %584 = sbr.rel (0) target = $region25
    $region24: #{tpu_custom_call.1} parent=1 // pred_region
      %585 = dma.done [#allocation4], 64
    $region25: #{tpu_custom_call.1} parent=1 // pred_fallthru
      _
    %586 = vsyncpa [#allocation3], 1
    %587 = vsyncpa [#allocation6], 1
    %588 = vsyncpa [#allocation4], 1

</llo_original>
